<compile_context>
chip_gen: v6e
topology: v6e:2x2x1
jax: 0.10.0
libtpu: 0.0.40
codegen_flags: <defaults>
</compile_context>

<pallas_src>
import jax
import jax.numpy as jnp
from jax import lax
from jax.experimental import pallas as pl
from jax.experimental.pallas import tpu as pltpu

EPS = 1e-5
LANE = 128      # vreg lane width
SUBLANE = 8     # vreg sublane count (f32)


def _round_up(n: int, m: int) -> int:
    return ((n + m - 1) // m) * m


def _cdiv(a: int, b: int) -> int:
    return -(-a // b)


def _vmem_capacity_bytes() -> int:
    """Per-core VMEM capacity; conservative fallback (v7x) if the query fails."""
    try:
        info = pltpu.get_tpu_info()
        cap = int(getattr(info, "vmem_capacity_bytes", 0))
        if cap > 0:
            return cap
    except Exception:
        pass
    return 64 * 1024 * 1024


def residual_block_kernel(x_ref, w1_ref, b1_ref, w2_ref, b2_ref, o_ref, acc_ref):
    k = pl.program_id(1)                     # hidden-dim (reduction) axis, last in grid

    @pl.when(k == 0)
    def _():
        acc_ref[...] = jnp.zeros_like(acc_ref)

    x = x_ref[...]                                                    # (TB, Dp) f32

    # Linear1 (BN1 folded) -> ReLU.  Dropout is identity in eval mode.
    # TODO(synk): training-mode dropout would need pltpu.prng_seed/prng_random_bits.
    h = jnp.dot(x.astype(w1_ref.dtype), w1_ref[...],
                preferred_element_type=jnp.float32)                   # (TB, THp)
    h = jnp.maximum(h + b1_ref[...], 0.0)

    # Partial Linear2 (BN2 folded); hidden dim is the reduction axis -> accumulate.
    acc_ref[...] += jnp.dot(h.astype(w2_ref.dtype), w2_ref[...],
                            preferred_element_type=jnp.float32)       # (TB, Dp)

    @pl.when(k == pl.num_programs(1) - 1)
    def _():
        # Residual add (un-cast f32 x) + bias + final ReLU.
        o_ref[...] = jnp.maximum(x + acc_ref[...] + b2_ref[...], 0.0).astype(o_ref.dtype)


def residual_block(x, params, *, block_batch=512, block_hidden=None,
                   matmul_dtype=jnp.bfloat16, min_pallas_batch=128,
                   vmem_budget_bytes=None):
    """x: (B, D) float32. params: dict from init_params (PyTorch-shaped, transposed W)."""
    B, D = x.shape
    H = params["w1"].shape[1]

    # ---- Fold eval-mode BatchNorm into the Linear layers (pure precompute) ----
    s1 = params["g1"] * lax.rsqrt(params["v1"] + EPS)                 # (1, H)
    w1f = params["w1"] * s1                                           # (D, H)
    b1f = (params["b1"] - params["m1"]) * s1 + params["be1"]          # (1, H)
    s2 = params["g2"] * lax.rsqrt(params["v2"] + EPS)                 # (1, D)
    w2f = params["w2"] * s2                                           # (H, D)
    b2f = (params["b2"] - params["m2"]) * s2 + params["be2"]          # (1, D)

    w1c = w1f.astype(matmul_dtype)
    w2c = w2f.astype(matmul_dtype)

    # ---- Small-batch fallback: tiny B underfills the MXU and is overhead-bound ----
    if B < min_pallas_batch:
        xf = x.astype(jnp.float32)
        h = jnp.dot(xf.astype(matmul_dtype), w1c, preferred_element_type=jnp.float32)
        h = jnp.maximum(h + b1f, 0.0)
        y = jnp.dot(h.astype(matmul_dtype), w2c, preferred_element_type=jnp.float32) + b2f
        return jnp.maximum(xf + y, 0.0)

    mm_itemsize = jnp.dtype(matmul_dtype).itemsize
    if vmem_budget_bytes is None:
        vmem_budget_bytes = int(0.70 * _vmem_capacity_bytes())

    # ---- Lane-dense feature padding ----
    Dp = _round_up(D, LANE)
    Hp = _round_up(H, LANE)

    # ---- Hidden (reduction) tile: keep double-buffered weights under ~40% budget ----
    def _weight_bytes(thp):
        # All input specs are double-buffered by Pallas, even constant-index ones.
        return 2 * (2 * Dp * thp * mm_itemsize + (thp + Dp) * 4)

    if block_hidden is not None:
        THp = min(_round_up(block_hidden, LANE), Hp)
    else:
        THp = Hp
        while THp > LANE and _weight_bytes(THp) > 0.4 * vmem_budget_bytes:
            THp = max(LANE, _round_up(THp // 2, LANE))
    nk = _cdiv(Hp, THp)
    THp = _round_up(_cdiv(Hp, nk), LANE)               # balance hidden tiles
    Hp = nk * THp

    # ---- Batch tile: balanced (minimal padding), enough steps for megacore, VMEM-safe ----
    def _vmem_estimate(tb, thp):
        w = _weight_bytes(thp)                          # weights + biases, 2x buffered
        xio = 2 * tb * Dp * 4 + 2 * tb * Dp * 4         # x in + out, 2x buffered
        acc = tb * Dp * 4                               # accumulator scratch
        interm = tb * thp * (4 + mm_itemsize)           # h (f32) + its matmul cast
        return w + xio + acc + interm

    nt = max(1, _cdiv(B, block_batch))
    # >= a few grid steps (v7x megacore sharding + DMA/compute overlap) but never
    # shrink tiles below ~256 rows (per-step overhead dominates small tiles).
    nt = max(nt, min(4, max(1, B // 256)))
    TB = _round_up(_cdiv(B, nt), SUBLANE)
    while TB > SUBLANE and _vmem_estimate(TB, THp) > vmem_budget_bytes:
        TB = max(SUBLANE, _round_up(TB // 2, SUBLANE))
    nt = _cdiv(B, TB)
    TB = _round_up(_cdiv(B, nt), SUBLANE)               # rebalance -> minimal batch pad
    Bp = nt * TB

    # ---- Pad operands (zero padding keeps the valid region exact) ----
    xp = jnp.pad(x.astype(jnp.float32), ((0, Bp - B), (0, Dp - D)))
    w1p = jnp.pad(w1c, ((0, Dp - D), (0, Hp - H)))
    b1p = jnp.pad(b1f, ((0, 0), (0, Hp - H))).astype(jnp.float32)
    w2p = jnp.pad(w2c, ((0, Hp - H), (0, Dp - D)))
    b2p = jnp.pad(b2f, ((0, 0), (0, Dp - D))).astype(jnp.float32)

    grid = (nt, nk)                                     # reduction axis last
    in_specs = [
        pl.BlockSpec((TB, Dp), lambda i, k: (i, 0)),    # x tile, streamed over batch
        pl.BlockSpec((Dp, THp), lambda i, k: (0, k)),   # W1 (BN-folded), hidden-tiled
        pl.BlockSpec((1, THp), lambda i, k: (0, k)),    # b1 (BN-folded)
        pl.BlockSpec((THp, Dp), lambda i, k: (k, 0)),   # W2 (BN-folded), hidden-tiled
        pl.BlockSpec((1, Dp), lambda i, k: (0, 0)),     # b2 (BN-folded), resident
    ]
    out_specs = pl.BlockSpec((TB, Dp), lambda i, k: (i, 0))

    flops = 2 * Bp * Dp * Hp * 2                        # two matmuls
    bytes_accessed = (
        Bp * Dp * 4 * 2                                 # x in, out
        + nt * (w1p.size + w2p.size) * mm_itemsize      # weights re-read per batch tile
        + nt * (b1p.size + b2p.size) * 4
    )
    cost = pl.CostEstimate(flops=flops, transcendentals=0,
                           bytes_accessed=int(bytes_accessed))

    out = pl.pallas_call(
        residual_block_kernel,
        out_shape=jax.ShapeDtypeStruct((Bp, Dp), jnp.float32),
        grid=grid,
        in_specs=in_specs,
        out_specs=out_specs,
        scratch_shapes=[pltpu.VMEM((TB, Dp), jnp.float32)],
        compiler_params=pltpu.CompilerParams(
            dimension_semantics=("parallel", "arbitrary"),
            vmem_limit_bytes=int(vmem_budget_bytes),
        ),
        cost_estimate=cost,
    )(xp, w1p, b1p, w2p, b2p)

    return out[:B, :D]


def init_params(key, input_dim, hidden_dim):
    """Deterministic synthetic parameters matching the PyTorch module's shapes."""
    ks = jax.random.split(key, 10)
    p = {}
    # Linear1: PyTorch weight is (H, D); we store its transpose (D, H) for x @ W.
    p["w1"] = jax.random.normal(ks[0], (input_dim, hidden_dim), jnp.float32) * 0.1
    p["b1"] = jax.random.normal(ks[1], (1, hidden_dim), jnp.float32) * 0.1
    # BatchNorm1d(hidden_dim): gamma, beta, running_mean, running_var
    p["g1"] = 1.0 + 0.1 * jax.random.normal(ks[2], (1, hidden_dim), jnp.float32)
    p["be1"] = 0.1 * jax.random.normal(ks[3], (1, hidden_dim), jnp.float32)
    p["m1"] = 0.1 * jax.random.normal(ks[4], (1, hidden_dim), jnp.float32)
    p["v1"] = 0.5 + jax.random.uniform(ks[5], (1, hidden_dim), jnp.float32)
    # Linear2: PyTorch weight is (D, H); we store its transpose (H, D).
    p["w2"] = jax.random.normal(ks[6], (hidden_dim, input_dim), jnp.float32) * 0.1
    p["b2"] = jax.random.normal(ks[7], (1, input_dim), jnp.float32) * 0.1
    # BatchNorm1d(input_dim)
    p["g2"] = 1.0 + 0.1 * jax.random.normal(ks[8], (1, input_dim), jnp.float32)
    p["be2"] = 0.1 * jax.random.normal(ks[9], (1, input_dim), jnp.float32)
    p["m2"] = jnp.zeros((1, input_dim), jnp.float32)
    p["v2"] = jnp.ones((1, input_dim), jnp.float32)
    return p


def residual_block_ref(x, p):
    """Pure-JAX reference (eval-mode PyTorch semantics, un-folded BN)."""
    h = x @ p["w1"] + p["b1"]
    h = (h - p["m1"]) / jnp.sqrt(p["v1"] + EPS) * p["g1"] + p["be1"]
    h = jnp.maximum(h, 0.0)
    y = h @ p["w2"] + p["b2"]
    y = (y - p["m2"]) / jnp.sqrt(p["v2"] + EPS) * p["g2"] + p["be2"]
    return jnp.maximum(x + y, 0.0)


if __name__ == "__main__":
    key = jax.random.PRNGKey(0)
    kx, kp, kx2, kp2 = jax.random.split(key, 4)

    # --- Strict numeric check: f32 MXU operands, forced Pallas path ---
    batch, input_dim, hidden_dim = 8, 32, 64
    x = jax.random.normal(kx, (batch, input_dim), jnp.float32)
    params = init_params(kp, input_dim, hidden_dim)
    ref = residual_block_ref(x, params)

    out_f32 = jax.block_until_ready(
        residual_block(x, params, matmul_dtype=jnp.float32, min_pallas_batch=1))
    assert out_f32.shape == (batch, input_dim)
    assert jnp.allclose(out_f32, ref, atol=2e-5, rtol=2e-5), "f32 kernel mismatch vs reference"

    # --- Default path: bf16 MXU operands (f32 accumulation), looser tolerance ---
    out_bf16 = jax.block_until_ready(residual_block(x, params, min_pallas_batch=1))
    assert jnp.allclose(out_bf16, ref, atol=3e-2, rtol=3e-2), "bf16 kernel mismatch vs reference"

    # --- Exercise the hidden-dim (reduction) tiling path: 2 hidden tiles, 3 batch tiles ---
    batch2, d2, h2 = 24, 32, 256
    x2 = jax.random.normal(kx2, (batch2, d2), jnp.float32)
    params2 = init_params(kp2, d2, h2)
    out2 = jax.block_until_ready(
        residual_block(x2, params2, matmul_dtype=jnp.float32,
                       block_hidden=128, min_pallas_batch=1))
    ref2 = residual_block_ref(x2, params2)
    assert jnp.allclose(out2, ref2, atol=5e-5, rtol=5e-5), "tiled-hidden kernel mismatch"

    # --- Small-batch XLA fallback (default threshold) matches too ---
    out_fb = jax.block_until_ready(residual_block(x, params))
    assert jnp.allclose(out_fb, ref, atol=3e-2, rtol=3e-2), "fallback mismatch vs reference"

    print("KERNEL_OK")
</pallas_src>

<mosaic_0001>
module attributes {stable_mosaic.version = 11 : i64} {
  func.func @residual_block_kernel(%arg0: i32, %arg1: i32, %arg2: memref<8x128xf32, #tpu.memory_space<vmem>>, %arg3: memref<128x128xf32, #tpu.memory_space<vmem>>, %arg4: memref<1x128xf32, #tpu.memory_space<vmem>>, %arg5: memref<128x128xf32, #tpu.memory_space<vmem>>, %arg6: memref<1x128xf32, #tpu.memory_space<vmem>>, %arg7: memref<8x128xf32, #tpu.memory_space<vmem>>, %arg8: memref<8x128xf32, #tpu.memory_space<vmem>>) attributes {dimension_semantics = [#tpu.dimension_semantics<parallel>, #tpu.dimension_semantics<arbitrary>], iteration_bounds = array<i64: 1, 1>, scalar_prefetch = 0 : i64, scratch_operands = 1 : i64, tpu.core_type = #tpu.core_type<tc>, window_params = [{transform_indices = @transform_0, window_bounds = array<i64: 8, 128>}, {transform_indices = @transform_1, window_bounds = array<i64: 128, 128>}, {transform_indices = @transform_2, window_bounds = array<i64: 1, 128>}, {transform_indices = @transform_3, window_bounds = array<i64: 128, 128>}, {pipeline_mode = #tpu.pipeline_mode<synchronous>, transform_indices = @transform_4, window_bounds = array<i64: 1, 128>}, {transform_indices = @transform_5, window_bounds = array<i64: 8, 128>}]} {
    %c0_i32 = arith.constant 0 : i32
    %0 = arith.cmpi eq, %arg1, %c0_i32 : i32
    %1 = arith.extui %0 : i1 to i32
    %c0_i32_0 = arith.constant 0 : i32
    %2 = arith.cmpi ne, %1, %c0_i32_0 : i32
    scf.if %2 {
      %cst_16 = arith.constant 0.000000e+00 : f32
      %19 = vector.broadcast %cst_16 : f32 to vector<8x128xf32>
      %c0_17 = arith.constant 0 : index
      %c0_18 = arith.constant 0 : index
      %20 = vector.load %arg8[%c0_17, %c0_18] : memref<8x128xf32, #tpu.memory_space<vmem>>, vector<8x128xf32>
      tpu.vector_store %arg8[%c0_17, %c0_18], %19 {strides = array<i32>} : memref<8x128xf32, #tpu.memory_space<vmem>>, vector<8x128xf32>,
    } else {
    }
    %c0 = arith.constant 0 : index
    %c0_1 = arith.constant 0 : index
    %3 = vector.load %arg2[%c0, %c0_1] : memref<8x128xf32, #tpu.memory_space<vmem>>, vector<8x128xf32>
    %c0_2 = arith.constant 0 : index
    %c0_3 = arith.constant 0 : index
    %4 = vector.load %arg3[%c0_2, %c0_3] : memref<128x128xf32, #tpu.memory_space<vmem>>, vector<128x128xf32>
    %cst = arith.constant dense<0.000000e+00> : vector<8x128xf32>
    %5 = tpu.matmul %3, %4, %cst {dimension_numbers = #tpu.dot_dimension_numbers<[1], [0], [0], [1], [0, 0, 1, 1], [], []>} : vector<8x128xf32>, vector<128x128xf32>, vector<8x128xf32> -> vector<8x128xf32>
    %c0_4 = arith.constant 0 : index
    %c0_5 = arith.constant 0 : index
    %6 = vector.load %arg4[%c0_4, %c0_5] : memref<1x128xf32, #tpu.memory_space<vmem>>, vector<1x128xf32>
    %7 = vector.broadcast %6 : vector<1x128xf32> to vector<8x128xf32>
    %8 = arith.addf %5, %7 : vector<8x128xf32>
    %cst_6 = arith.constant 0.000000e+00 : f32
    %9 = vector.broadcast %cst_6 : f32 to vector<8x128xf32>
    %10 = arith.maximumf %8, %9 : vector<8x128xf32>
    %c0_7 = arith.constant 0 : index
    %c0_8 = arith.constant 0 : index
    %11 = vector.load %arg8[%c0_7, %c0_8] : memref<8x128xf32, #tpu.memory_space<vmem>>, vector<8x128xf32>
    %c0_9 = arith.constant 0 : index
    %c0_10 = arith.constant 0 : index
    %12 = vector.load %arg5[%c0_9, %c0_10] : memref<128x128xf32, #tpu.memory_space<vmem>>, vector<128x128xf32>
    %cst_11 = arith.constant dense<0.000000e+00> : vector<8x128xf32>
    %13 = tpu.matmul %10, %12, %cst_11 {dimension_numbers = #tpu.dot_dimension_numbers<[1], [0], [0], [1], [0, 0, 1, 1], [], []>} : vector<8x128xf32>, vector<128x128xf32>, vector<8x128xf32> -> vector<8x128xf32>
    %14 = arith.addf %11, %13 : vector<8x128xf32>
    %c0_12 = arith.constant 0 : index
    %c0_13 = arith.constant 0 : index
    %15 = vector.load %arg8[%c0_12, %c0_13] : memref<8x128xf32, #tpu.memory_space<vmem>>, vector<8x128xf32>
    tpu.vector_store %arg8[%c0_12, %c0_13], %14 {strides = array<i32>} : memref<8x128xf32, #tpu.memory_space<vmem>>, vector<8x128xf32>,
    %c0_i32_14 = arith.constant 0 : i32
    %16 = arith.cmpi eq, %arg1, %c0_i32_14 : i32
    %17 = arith.extui %16 : i1 to i32
    %c0_i32_15 = arith.constant 0 : i32
    %18 = arith.cmpi ne, %17, %c0_i32_15 : i32
    scf.if %18 {
      %c0_16 = arith.constant 0 : index
      %c0_17 = arith.constant 0 : index
      %19 = vector.load %arg8[%c0_16, %c0_17] : memref<8x128xf32, #tpu.memory_space<vmem>>, vector<8x128xf32>
      %20 = arith.addf %3, %19 : vector<8x128xf32>
      %c0_18 = arith.constant 0 : index
      %c0_19 = arith.constant 0 : index
      %21 = vector.load %arg6[%c0_18, %c0_19] : memref<1x128xf32, #tpu.memory_space<vmem>>, vector<1x128xf32>
      %22 = vector.broadcast %21 : vector<1x128xf32> to vector<8x128xf32>
      %23 = arith.addf %20, %22 : vector<8x128xf32>
      %cst_20 = arith.constant 0.000000e+00 : f32
      %24 = vector.broadcast %cst_20 : f32 to vector<8x128xf32>
      %25 = arith.maximumf %23, %24 : vector<8x128xf32>
      %c0_21 = arith.constant 0 : index
      %c0_22 = arith.constant 0 : index
      %26 = vector.load %arg7[%c0_21, %c0_22] : memref<8x128xf32, #tpu.memory_space<vmem>>, vector<8x128xf32>
      tpu.vector_store %arg7[%c0_21, %c0_22], %25 {strides = array<i32>} : memref<8x128xf32, #tpu.memory_space<vmem>>, vector<8x128xf32>,
    } else {
    }
    return
  }
  func.func @transform_0(%arg0: i32, %arg1: i32) -> (i32, i32) {
    %c0_i32 = arith.constant 0 : i32
    %c0_i32_0 = arith.constant 0 : i32
    return %arg0, %c0_i32 : i32, i32
  }
  func.func @transform_1(%arg0: i32, %arg1: i32) -> (i32, i32) {
    %c0_i32 = arith.constant 0 : i32
    %c0_i32_0 = arith.constant 0 : i32
    return %c0_i32, %arg1 : i32, i32
  }
  func.func @transform_2(%arg0: i32, %arg1: i32) -> (i32, i32) {
    %c0_i32 = arith.constant 0 : i32
    %c0_i32_0 = arith.constant 0 : i32
    return %c0_i32, %arg1 : i32, i32
  }
  func.func @transform_3(%arg0: i32, %arg1: i32) -> (i32, i32) {
    %c0_i32 = arith.constant 0 : i32
    %c0_i32_0 = arith.constant 0 : i32
    return %arg1, %c0_i32 : i32, i32
  }
  func.func @transform_4(%arg0: i32, %arg1: i32) -> (i32, i32) {
    %c0_i32 = arith.constant 0 : i32
    %c0_i32_0 = arith.constant 0 : i32
    %c0_i32_1 = arith.constant 0 : i32
    return %c0_i32, %c0_i32_0 : i32, i32
  }
  func.func @transform_5(%arg0: i32, %arg1: i32) -> (i32, i32) {
    %c0_i32 = arith.constant 0 : i32
    %c0_i32_0 = arith.constant 0 : i32
    return %arg0, %c0_i32 : i32, i32
  }
}

</mosaic_0001>

<llo_original>
// kernel: tpu_custom_call.1
$region0: #{tpu_custom_call.1}
  #allocation0 [shape = 'u32[]', space=smem, size = 0x4, offset = 0x4, fixed_abs, tag = 'smem constant byte address 0x4 - core index']
  #allocation1 [shape = 'u32[144,128]{1,0:T(1,128)}', space=vmem, size = 0x12000, scoped, tag = 'internal scratch']
  #allocation2 [shape = 'f32[8,128]{1,0:T(8,128)}', space=vmem, size = 0x1000, scoped, tag = 'scratch operand']
  %s0 = inlined_call_operand.hbm [shape: f32[8,128], index: 0, kind: input, shape index: {}]
  %s1 = inlined_call_operand.hbm [shape: f32[128,128], index: 1, kind: input, shape index: {}]
  %s2 = inlined_call_operand.vmem [shape: f32[1,128], index: 2, kind: input, shape index: {}]
  %s3 = inlined_call_operand.hbm [shape: f32[128,128], index: 3, kind: input, shape index: {}]
  %s4 = inlined_call_operand.vmem [shape: f32[1,128], index: 4, kind: input, shape index: {}]
  %s5 = inlined_call_operand.hbm [shape: f32[8,128], index: 5, kind: output, shape index: {}]
  %s6 = sld [smem:[#allocation0]]
  $region50: #{tpu_custom_call.1} parent=0
    _
  %s8 = ssub.s32 1, %s6
  %s9 = scalar_select 0, %s8, %s6
  $region1: #{tpu_custom_call.1} parent=0
    #allocation3 [shape = 'u8[4096]{0}', space=vmem, size = 0x1000, scoped, tag = 'input window, operand 0, single buffered']
    #allocation4 [shape = 's32[1]{0}', space=sflag, size = 0x4, scoped, tag = 'scoped memory for tpu_custom_call.1']
    #allocation5 [shape = 's32[1]{0}', space=sflag, size = 0x4, scoped, tag = 'scoped memory for tpu_custom_call.1']
    #allocation6 [shape = 'u8[65536]{0}', space=vmem, size = 0x10000, scoped, tag = 'input window, operand 1, single buffered']
    #allocation7 [shape = 's32[1]{0}', space=sflag, size = 0x4, scoped, tag = 'scoped memory for tpu_custom_call.1']
    #allocation8 [shape = 'u8[65536]{0}', space=vmem, size = 0x10000, scoped, tag = 'input window, operand 3, single buffered']
    #allocation9 [shape = 'u8[4096]{0}', space=vmem, size = 0x1000, scoped, tag = 'output window, operand 0, single buffered']
    %10 = vsyncpa [#allocation4], 0
    %11 = vsyncpa [#allocation7], 0
    %12 = vsyncpa [#allocation5], 0
    // Predicated region
    $region2: #{tpu_custom_call.1} parent=1 // pred_check
      _
    $region3: #{tpu_custom_call.1} parent=1 // pred_check_branch
      %14 = sbr.rel (0) target = $region5
    $region4: #{tpu_custom_call.1} parent=1 // pred_region
      %s16 = ssub.s32 128, 128
      %17 = vsyncadd [#allocation4], %s16
      %s19 = sshll.u32 [#allocation3], 4
      %s20 = int_to_ptr.vmem [resolvable:$true] %s19
      %22 = dma.hbm_to_vmem [thread:$0]  %s0, 128, %s20, [#allocation4]
    $region5: #{tpu_custom_call.1} parent=1 // pred_fallthru
      _
    // Predicated region
    $region6: #{tpu_custom_call.1} parent=1 // pred_check
      _
    $region7: #{tpu_custom_call.1} parent=1 // pred_check_branch
      %24 = sbr.rel (0) target = $region9
    $region8: #{tpu_custom_call.1} parent=1 // pred_region
      %s26 = ssub.s32 2048, 2048
      %27 = vsyncadd [#allocation7], %s26
      %s28 = sshll.u32 [#allocation6], 4
      %s29 = int_to_ptr.vmem [resolvable:$true] %s28
      %34 = dma.hbm_to_vmem [thread:$0]  %s1, 2048, %s29, [#allocation7], 128, 128, 8
    $region9: #{tpu_custom_call.1} parent=1 // pred_fallthru
      _
    // Predicated region
    $region10: #{tpu_custom_call.1} parent=1 // pred_check
      _
    $region11: #{tpu_custom_call.1} parent=1 // pred_check_branch
      %36 = sbr.rel (0) target = $region13
    $region12: #{tpu_custom_call.1} parent=1 // pred_region
      _
    $region13: #{tpu_custom_call.1} parent=1 // pred_fallthru
      _
    // Predicated region
    $region14: #{tpu_custom_call.1} parent=1 // pred_check
      _
    $region15: #{tpu_custom_call.1} parent=1 // pred_check_branch
      %38 = sbr.rel (0) target = $region17
    $region16: #{tpu_custom_call.1} parent=1 // pred_region
      %s40 = ssub.s32 2048, 2048
      %41 = vsyncadd [#allocation7], %s40
      %s42 = sshll.u32 [#allocation8], 4
      %s43 = int_to_ptr.vmem [resolvable:$true] %s42
      %48 = dma.hbm_to_vmem [thread:$0]  %s3, 2048, %s43, [#allocation7], 128, 128, 8
    $region17: #{tpu_custom_call.1} parent=1 // pred_fallthru
      _
    // Predicated region
    $region18: #{tpu_custom_call.1} parent=1 // pred_check
      _
    $region19: #{tpu_custom_call.1} parent=1 // pred_check_branch
      %50 = sbr.rel (0) target = $region21
    $region20: #{tpu_custom_call.1} parent=1 // pred_region
      _
    $region21: #{tpu_custom_call.1} parent=1 // pred_fallthru
      _
    // Predicated region
    $region22: #{tpu_custom_call.1} parent=1 // pred_check
      _
    $region23: #{tpu_custom_call.1} parent=1 // pred_check_branch
      %52 = sbr.rel (0) target = $region25
    $region24: #{tpu_custom_call.1} parent=1 // pred_region
      %53 = dma.done [#allocation4], 128
    $region25: #{tpu_custom_call.1} parent=1 // pred_fallthru
      _
    // Predicated region
    $region26: #{tpu_custom_call.1} parent=1 // pred_check
      _
    $region27: #{tpu_custom_call.1} parent=1 // pred_check_branch
      %55 = sbr.rel (0) target = $region29
    $region28: #{tpu_custom_call.1} parent=1 // pred_region
      %56 = dma.done [#allocation7], 2048
    $region29: #{tpu_custom_call.1} parent=1 // pred_fallthru
      _
    // Predicated region
    $region30: #{tpu_custom_call.1} parent=1 // pred_check
      _
    $region31: #{tpu_custom_call.1} parent=1 // pred_check_branch
      %58 = sbr.rel (0) target = $region33
    $region32: #{tpu_custom_call.1} parent=1 // pred_region
      %59 = dma.done [#allocation7], 2048
    $region33: #{tpu_custom_call.1} parent=1 // pred_fallthru
      _
    %p60 = scmp.eq.s32.totalorder 0, 0
    // Predicated region
    $region34: #{tpu_custom_call.1} parent=1 // pred_check
      %p61 = pneg %p60
    $region35: #{tpu_custom_call.1} parent=1 // pred_check_branch
      %63 = sbr.rel (%p61) target = $region37
    $region36: #{tpu_custom_call.1} parent=1 // pred_region
      %64 = vst [vmem:[#allocation2] sm:$0xff] 0.0
    $region37: #{tpu_custom_call.1} parent=1 // pred_fallthru
      _
    %v65 = vld [vmem:[#allocation3] sm:$0xff]
    %v66 = vld [vmem:[#allocation6] sm:$0xff]
    %v67 = vld [vmem:[#allocation6 + $0x8] sm:$0xff]
    %v68 = vld [vmem:[#allocation6 + $0x10] sm:$0xff]
    %v69 = vld [vmem:[#allocation6 + $0x18] sm:$0xff]
    %v70 = vld [vmem:[#allocation6 + $0x20] sm:$0xff]
    %v71 = vld [vmem:[#allocation6 + $0x28] sm:$0xff]
    %v72 = vld [vmem:[#allocation6 + $0x30] sm:$0xff]
    %v73 = vld [vmem:[#allocation6 + $0x38] sm:$0xff]
    %v74 = vld [vmem:[#allocation6 + $0x40] sm:$0xff]
    %v75 = vld [vmem:[#allocation6 + $0x48] sm:$0xff]
    %v76 = vld [vmem:[#allocation6 + $0x50] sm:$0xff]
    %v77 = vld [vmem:[#allocation6 + $0x58] sm:$0xff]
    %v78 = vld [vmem:[#allocation6 + $0x60] sm:$0xff]
    %v79 = vld [vmem:[#allocation6 + $0x68] sm:$0xff]
    %v80 = vld [vmem:[#allocation6 + $0x70] sm:$0xff]
    %v81 = vld [vmem:[#allocation6 + $0x78] sm:$0xff]
    %v82 = vld [vmem:[%s2] sm:$0x1]
    %v84 = vlaneseq
    %v85 = vshrl.u32 %v84, 7
    %v86 = vsub.s32 0, %v85
    %v87 = vrot.slane %v82, %v86
    %89 = vmatprep.subr.mxu0 0.0
    %90 = vmatpush1.msra.mxu0 %v81
    %91 = vmatprep.subr.mxu0 0.0
    %92 = vmatpush1.msra.mxu0 %v80
    %93 = vmatprep.subr.mxu0 0.0
    %94 = vmatpush1.msra.mxu0 %v79
    %95 = vmatprep.subr.mxu0 0.0
    %96 = vmatpush1.msra.mxu0 %v78
    %97 = vmatprep.subr.mxu0 0.0
    %98 = vmatpush1.msra.mxu0 %v77
    %99 = vmatprep.subr.mxu0 0.0
    %100 = vmatpush1.msra.mxu0 %v76
    %101 = vmatprep.subr.mxu0 0.0
    %102 = vmatpush1.msra.mxu0 %v75
    %103 = vmatprep.subr.mxu0 0.0
    %104 = vmatpush1.msra.mxu0 %v74
    %105 = vmatprep.subr.mxu0 0.0
    %106 = vmatpush1.msra.mxu0 %v73
    %107 = vmatprep.subr.mxu0 0.0
    %108 = vmatpush1.msra.mxu0 %v72
    %109 = vmatprep.subr.mxu0 0.0
    %110 = vmatpush1.msra.mxu0 %v71
    %111 = vmatprep.subr.mxu0 0.0
    %112 = vmatpush1.msra.mxu0 %v70
    %113 = vmatprep.subr.mxu0 0.0
    %114 = vmatpush1.msra.mxu0 %v69
    %115 = vmatprep.subr.mxu0 0.0
    %116 = vmatpush1.msra.mxu0 %v68
    %117 = vmatprep.subr.mxu0 0.0
    %118 = vmatpush1.msra.mxu0 %v67
    %119 = vmatprep.subr.mxu0 0.0
    %120 = vmatpush1.msra.mxu0 %v66
    %121 = vmatprep.subr.mxu0 0.0
    %122 = vmatpush2.msra.mxu0 0.0
    %123 = vmatprep.subr.mxu0 0.0
    %124 = vmatpush2.msra.mxu0 0.0
    %125 = vmatprep.subr.mxu0 0.0
    %126 = vmatpush2.msra.mxu0 0.0
    %127 = vmatprep.subr.mxu0 0.0
    %128 = vmatpush2.msra.mxu0 0.0
    %129 = vmatprep.subr.mxu0 0.0
    %130 = vmatpush2.msra.mxu0 0.0
    %131 = vmatprep.subr.mxu0 0.0
    %132 = vmatpush2.msra.mxu0 0.0
    %133 = vmatprep.subr.mxu0 0.0
    %134 = vmatpush2.msra.mxu0 0.0
    %135 = vmatprep.subr.mxu0 0.0
    %136 = vmatpush2.msra.mxu0 0.0
    %137 = vmatprep.subr.mxu0 0.0
    %138 = vmatpush2.msra.mxu0 0.0
    %139 = vmatprep.subr.mxu0 0.0
    %140 = vmatpush2.msra.mxu0 0.0
    %141 = vmatprep.subr.mxu0 0.0
    %142 = vmatpush2.msra.mxu0 0.0
    %143 = vmatprep.subr.mxu0 0.0
    %144 = vmatpush2.msra.mxu0 0.0
    %145 = vmatprep.subr.mxu0 0.0
    %146 = vmatpush2.msra.mxu0 0.0
    %147 = vmatprep.subr.mxu0 0.0
    %148 = vmatpush2.msra.mxu0 0.0
    %149 = vmatprep.subr.mxu0 0.0
    %150 = vmatpush2.msra.mxu0 0.0
    %151 = vmatprep.subr.mxu0 0.0
    %152 = vmatpush2.msra.mxu0 0.0
    %153 = vmatprep.mubr.f32.mxu0 0.0
    %154 = vmatmul.mubr.f32.gmra.mxu0 %v65
    %v155 = vpop.f32.mrf.mxu0
    %v156 = vadd.f32 %v87, %v155
    %v157 = vpop.f32.mrf.mxu0
    %158 = vdwg.mxu0
    %v159 = vmax.f32 %v156, 0.0
    %v160 = vld [vmem:[#allocation2] sm:$0xff]
    %v161 = vld [vmem:[#allocation8] sm:$0xff]
    %v162 = vld [vmem:[#allocation8 + $0x8] sm:$0xff]
    %v163 = vld [vmem:[#allocation8 + $0x10] sm:$0xff]
    %v164 = vld [vmem:[#allocation8 + $0x18] sm:$0xff]
    %v165 = vld [vmem:[#allocation8 + $0x20] sm:$0xff]
    %v166 = vld [vmem:[#allocation8 + $0x28] sm:$0xff]
    %v167 = vld [vmem:[#allocation8 + $0x30] sm:$0xff]
    %v168 = vld [vmem:[#allocation8 + $0x38] sm:$0xff]
    %v169 = vld [vmem:[#allocation8 + $0x40] sm:$0xff]
    %v170 = vld [vmem:[#allocation8 + $0x48] sm:$0xff]
    %v171 = vld [vmem:[#allocation8 + $0x50] sm:$0xff]
    %v172 = vld [vmem:[#allocation8 + $0x58] sm:$0xff]
    %v173 = vld [vmem:[#allocation8 + $0x60] sm:$0xff]
    %v174 = vld [vmem:[#allocation8 + $0x68] sm:$0xff]
    %v175 = vld [vmem:[#allocation8 + $0x70] sm:$0xff]
    %v176 = vld [vmem:[#allocation8 + $0x78] sm:$0xff]
    %177 = vmatprep.subr.mxu0 0.0
    %178 = vmatpush1.msra.mxu0 %v176
    %179 = vmatprep.subr.mxu0 0.0
    %180 = vmatpush1.msra.mxu0 %v175
    %181 = vmatprep.subr.mxu0 0.0
    %182 = vmatpush1.msra.mxu0 %v174
    %183 = vmatprep.subr.mxu0 0.0
    %184 = vmatpush1.msra.mxu0 %v173
    %185 = vmatprep.subr.mxu0 0.0
    %186 = vmatpush1.msra.mxu0 %v172
    %187 = vmatprep.subr.mxu0 0.0
    %188 = vmatpush1.msra.mxu0 %v171
    %189 = vmatprep.subr.mxu0 0.0
    %190 = vmatpush1.msra.mxu0 %v170
    %191 = vmatprep.subr.mxu0 0.0
    %192 = vmatpush1.msra.mxu0 %v169
    %193 = vmatprep.subr.mxu0 0.0
    %194 = vmatpush1.msra.mxu0 %v168
    %195 = vmatprep.subr.mxu0 0.0
    %196 = vmatpush1.msra.mxu0 %v167
    %197 = vmatprep.subr.mxu0 0.0
    %198 = vmatpush1.msra.mxu0 %v166
    %199 = vmatprep.subr.mxu0 0.0
    %200 = vmatpush1.msra.mxu0 %v165
    %201 = vmatprep.subr.mxu0 0.0
    %202 = vmatpush1.msra.mxu0 %v164
    %203 = vmatprep.subr.mxu0 0.0
    %204 = vmatpush1.msra.mxu0 %v163
    %205 = vmatprep.subr.mxu0 0.0
    %206 = vmatpush1.msra.mxu0 %v162
    %207 = vmatprep.subr.mxu0 0.0
    %208 = vmatpush1.msra.mxu0 %v161
    %209 = vmatprep.subr.mxu0 0.0
    %210 = vmatpush2.msra.mxu0 0.0
    %211 = vmatprep.subr.mxu0 0.0
    %212 = vmatpush2.msra.mxu0 0.0
    %213 = vmatprep.subr.mxu0 0.0
    %214 = vmatpush2.msra.mxu0 0.0
    %215 = vmatprep.subr.mxu0 0.0
    %216 = vmatpush2.msra.mxu0 0.0
    %217 = vmatprep.subr.mxu0 0.0
    %218 = vmatpush2.msra.mxu0 0.0
    %219 = vmatprep.subr.mxu0 0.0
    %220 = vmatpush2.msra.mxu0 0.0
    %221 = vmatprep.subr.mxu0 0.0
    %222 = vmatpush2.msra.mxu0 0.0
    %223 = vmatprep.subr.mxu0 0.0
    %224 = vmatpush2.msra.mxu0 0.0
    %225 = vmatprep.subr.mxu0 0.0
    %226 = vmatpush2.msra.mxu0 0.0
    %227 = vmatprep.subr.mxu0 0.0
    %228 = vmatpush2.msra.mxu0 0.0
    %229 = vmatprep.subr.mxu0 0.0
    %230 = vmatpush2.msra.mxu0 0.0
    %231 = vmatprep.subr.mxu0 0.0
    %232 = vmatpush2.msra.mxu0 0.0
    %233 = vmatprep.subr.mxu0 0.0
    %234 = vmatpush2.msra.mxu0 0.0
    %235 = vmatprep.subr.mxu0 0.0
    %236 = vmatpush2.msra.mxu0 0.0
    %237 = vmatprep.subr.mxu0 0.0
    %238 = vmatpush2.msra.mxu0 0.0
    %239 = vmatprep.subr.mxu0 0.0
    %240 = vmatpush2.msra.mxu0 0.0
    %241 = vmatprep.mubr.f32.mxu0 0.0
    %242 = vmatmul.mubr.f32.gmra.mxu0 %v159
    %v243 = vpop.f32.mrf.mxu0
    %v244 = vadd.f32 0.0, %v243
    %v245 = vpop.f32.mrf.mxu0
    %246 = vdwg.mxu0
    %v247 = vadd.f32 %v160, %v244
    %248 = vst [vmem:[#allocation2] sm:$0xff] %v247
    // Predicated region
    $region38: #{tpu_custom_call.1} parent=1 // pred_check
      %p249 = pneg %p60
    $region39: #{tpu_custom_call.1} parent=1 // pred_check_branch
      %251 = sbr.rel (%p249) target = $region41
    $region40: #{tpu_custom_call.1} parent=1 // pred_region
      %v252 = vld [vmem:[#allocation2] sm:$0xff]
      %v253 = vadd.f32 %v65, %v252
      %v254 = vld [vmem:[%s4] sm:$0x1]
      %v256 = vlaneseq
      %v257 = vshrl.u32 %v256, 7
      %v258 = vsub.s32 0, %v257
      %v259 = vrot.slane %v254, %v258
      %v261 = vadd.f32 %v253, %v259
      %v262 = vmax.f32 %v261, 0.0
      %263 = vst [vmem:[#allocation9] sm:$0xff] %v262
    $region41: #{tpu_custom_call.1} parent=1 // pred_fallthru
      _
    // Predicated region
    $region42: #{tpu_custom_call.1} parent=1 // pred_check
      _
    $region43: #{tpu_custom_call.1} parent=1 // pred_check_branch
      %265 = sbr.rel (0) target = $region45
    $region44: #{tpu_custom_call.1} parent=1 // pred_region
      %s267 = ssub.s32 128, 128
      %268 = vsyncadd [#allocation5], %s267
      %s270 = sshll.u32 [#allocation9], 4
      %s271 = int_to_ptr.vmem [resolvable:$true] %s270
      %273 = dma.vmem_to_hbm [thread:$0]  %s271, 128, %s5, [#allocation5]
    $region45: #{tpu_custom_call.1} parent=1 // pred_fallthru
      _
    // Predicated region
    $region46: #{tpu_custom_call.1} parent=1 // pred_check
      _
    $region47: #{tpu_custom_call.1} parent=1 // pred_check_branch
      %275 = sbr.rel (0) target = $region49
    $region48: #{tpu_custom_call.1} parent=1 // pred_region
      %276 = dma.done [#allocation5], 128
    $region49: #{tpu_custom_call.1} parent=1 // pred_fallthru
      _
    %277 = vsyncpa [#allocation4], 1
    %278 = vsyncpa [#allocation7], 1
    %279 = vsyncpa [#allocation5], 1

</llo_original>
